<compile_context>
chip_gen: v7x
topology: tpu7x:2x2x1
jax: 0.10.0
libtpu: 0.0.40
codegen_flags: <defaults>
</compile_context>

<pallas_src>
import functools

import jax
import jax.numpy as jnp
from jax import lax
from jax.experimental import pallas as pl
from jax.experimental.pallas import tpu as pltpu

_MIB = 1024 * 1024


# -----------------------------------------------------------------------------
# Dispatch helper: per-generation cutoff for keeping the table resident in VMEM.
# -----------------------------------------------------------------------------
def _small_table_cutoff_bytes():
    vmem_cap = 64 * _MIB  # conservative default (v7x: 64 MiB per TensorCore)
    try:
        info = pltpu.get_tpu_info()
        vmem_cap = int(getattr(info, "vmem_capacity_bytes", vmem_cap))
    except Exception:
        pass
    if vmem_cap >= 128 * _MIB:   # v5e / v6e (128 MiB VMEM)
        return 96 * _MIB
    return 44 * _MIB             # v7x (64 MiB / TC) and unknown chips


# -----------------------------------------------------------------------------
# Fast path: whole table resident in VMEM, single grid step.
# -----------------------------------------------------------------------------
def _small_table_kernel(batch, seq_len, unroll,
                        ids_ref, invlen_ref, w_hbm, o_ref, w_vmem):
    # ids_ref:    [B*S] int32   (SMEM, scalar prefetch)
    # invlen_ref: [B]   float32 (SMEM, scalar prefetch, = 1/src_lengths)
    # w_hbm:      [V, E]        weight left in HBM (memory_space=pl.ANY)
    # o_ref:      [B, E]        whole output (full-extent block, lane dense)
    # w_vmem:     [V, E]        VMEM scratch: the resident copy of the table
    emb = o_ref.shape[-1]

    # One HBM read of the table for the entire batch.
    pltpu.sync_copy(w_hbm, w_vmem)

    @pl.loop(0, batch)
    def _(b):
        def body(s, acc):
            tok = ids_ref[b * seq_len + s]
            return acc + w_vmem[pl.ds(tok, 1), :].astype(jnp.float32)

        acc = lax.fori_loop(0, seq_len, body,
                            jnp.zeros((1, emb), jnp.float32), unroll=unroll)
        o_ref[pl.ds(b, 1), :] = (acc * invlen_ref[b]).astype(o_ref.dtype)


def _forward_small_table(ids_flat, inv_len, weight, batch, seq_len):
    vocab, emb = weight.shape
    table_bytes = int(vocab * emb * jnp.dtype(weight.dtype).itemsize)
    kernel = functools.partial(_small_table_kernel, batch, seq_len,
                               bool(seq_len <= 32))
    return pl.pallas_call(
        kernel,
        out_shape=jax.ShapeDtypeStruct((batch, emb), weight.dtype),
        grid_spec=pltpu.PrefetchScalarGridSpec(
            num_scalar_prefetch=2,
            grid=(1,),
            in_specs=[pl.BlockSpec(memory_space=pl.ANY)],     # table: raw HBM ref
            out_specs=pl.BlockSpec((batch, emb),
                                   lambda i, ids, invlen: (0, 0)),
            scratch_shapes=[pltpu.VMEM((vocab, emb), weight.dtype)],
        ),
        compiler_params=pltpu.CompilerParams(
            dimension_semantics=("arbitrary",),
            vmem_limit_bytes=table_bytes + 16 * _MIB,
        ),
    )(ids_flat, inv_len, weight)


# -----------------------------------------------------------------------------
# General path: table in HBM, manual double-buffered row gather, grid = (B,).
# -----------------------------------------------------------------------------
def _row_gather_kernel(seq_len,
                       ids_ref, invlen_ref, w_hbm, o_ref,
                       rowbuf, sem, acc_ref):
    # ids_ref:    [B*S] int32   (SMEM, scalar prefetch)
    # invlen_ref: [B]   float32 (SMEM, scalar prefetch)
    # w_hbm:      [V, E]        weight in HBM (memory_space=pl.ANY)
    # o_ref:      [1, E]        output row for batch element b = program_id(0)
    # rowbuf:     [2, 1, E]     VMEM double buffer for gathered rows
    # sem:        DMA semaphores, shape (2,)
    # acc_ref:    [1, E] f32    VMEM accumulator
    b = pl.program_id(0)

    def fetch(s, slot):
        tok = ids_ref[b * seq_len + s]
        pltpu.make_async_copy(w_hbm.at[pl.ds(tok, 1), :],
                              rowbuf.at[slot], sem.at[slot]).start()

    fetch(0, 0)                              # prime slot 0
    acc_ref[...] = jnp.zeros_like(acc_ref)   # overlaps with the first DMA

    @pl.loop(0, seq_len)
    def _(s):
        slot = s & 1
        # Shape-matching descriptor; the semaphore identifies the DMA to wait on.
        pltpu.make_async_copy(w_hbm.at[pl.ds(0, 1), :],
                              rowbuf.at[slot], sem.at[slot]).wait()

        @pl.when(s + 1 < seq_len)
        def _():
            fetch(s + 1, 1 - slot)           # prefetch next row into other slot

        acc_ref[...] += rowbuf[slot].astype(jnp.float32)

    o_ref[...] = (acc_ref[...] * invlen_ref[b]).astype(o_ref.dtype)


def _forward_row_gather(ids_flat, inv_len, weight, batch, seq_len):
    emb = weight.shape[1]
    kernel = functools.partial(_row_gather_kernel, seq_len)
    out = pl.pallas_call(
        kernel,
        out_shape=jax.ShapeDtypeStruct((batch, 1, emb), weight.dtype),
        grid_spec=pltpu.PrefetchScalarGridSpec(
            num_scalar_prefetch=2,
            grid=(batch,),
            in_specs=[pl.BlockSpec(memory_space=pl.ANY)],
            out_specs=pl.BlockSpec((None, 1, emb),
                                   lambda b, ids, invlen: (b, 0, 0)),
            scratch_shapes=[
                pltpu.VMEM((2, 1, emb), weight.dtype),   # gathered-row double buffer
                pltpu.SemaphoreType.DMA((2,)),
                pltpu.VMEM((1, emb), jnp.float32),       # f32 accumulator
            ],
        ),
        compiler_params=pltpu.CompilerParams(
            dimension_semantics=("parallel",),           # v7x: rows over both TCs
            vmem_limit_bytes=32 * _MIB,
        ),
    )(ids_flat, inv_len, weight)
    return out.reshape(batch, emb)


# -----------------------------------------------------------------------------
# Public forward.
# -----------------------------------------------------------------------------
def custom_parallel_embedding_forward(ids, src_lengths, weight):
    """ids: [B, S] int; src_lengths: [B]; weight: [V, E].  Returns [B, E]."""
    batch, seq_len = ids.shape
    vocab, emb = weight.shape

    ids_flat = ids.reshape(batch * seq_len).astype(jnp.int32)
    # Precompute 1/len (B scalars) so it rides in SMEM with the ids; a zero
    # length gives inf, exactly like the PyTorch reference.
    inv_len = 1.0 / src_lengths.astype(jnp.float32)

    table_bytes = int(vocab * emb * jnp.dtype(weight.dtype).itemsize)
    if table_bytes <= _small_table_cutoff_bytes():
        return _forward_small_table(ids_flat, inv_len, weight, batch, seq_len)
    return _forward_row_gather(ids_flat, inv_len, weight, batch, seq_len)


def xavier_uniform(key, shape, dtype=jnp.float32):
    # torch.nn.init.xavier_uniform_ for a (num_embeddings, embedding_dim) matrix.
    fan_out, fan_in = shape
    bound = (6.0 / (fan_in + fan_out)) ** 0.5
    return jax.random.uniform(key, shape, dtype, minval=-bound, maxval=bound)


if __name__ == "__main__":
    # Small shapes consistent with the module: vocab=64, embedding_dim=128,
    # batch=4, seq=8; model-parallel world_size = 1.
    B, S, V, E = 4, 8, 64, 128

    key = jax.random.PRNGKey(0)
    k_w, k_ids, k_len = jax.random.split(key, 3)

    weight = xavier_uniform(k_w, (V, E))                                # [V, E]
    ids = jax.random.randint(k_ids, (B, S), 0, V, dtype=jnp.int32)      # [B, S]
    src_lengths = jax.random.randint(k_len, (B,), 1, S + 1).astype(jnp.float32)

    # Pure-JAX reference of the exact PyTorch semantics.
    ref = jnp.take(weight, ids, axis=0).sum(axis=1) * (1.0 / src_lengths)[:, None]

    # Auto-dispatch: at this size the table-resident-in-VMEM fast path fires.
    out = jax.block_until_ready(
        custom_parallel_embedding_forward(ids, src_lengths, weight))
    assert out.shape == (B, E)
    assert jnp.allclose(out, ref, atol=1e-5, rtol=1e-5), float(
        jnp.max(jnp.abs(out - ref)))

    # Also exercise the large-table manual-DMA gather path on the same inputs.
    ids_flat = ids.reshape(B * S).astype(jnp.int32)
    inv_len = 1.0 / src_lengths.astype(jnp.float32)
    out_g = jax.block_until_ready(
        _forward_row_gather(ids_flat, inv_len, weight, B, S))
    assert out_g.shape == (B, E)
    assert jnp.allclose(out_g, ref, atol=1e-5, rtol=1e-5), float(
        jnp.max(jnp.abs(out_g - ref)))

    print("KERNEL_OK")
</pallas_src>

<mosaic_0001>
module attributes {stable_mosaic.version = 11 : i64} {
  func.func @_small_table_kernel(%arg0: i32, %arg1: memref<32xi32, #tpu.memory_space<smem>>, %arg2: memref<4xf32, #tpu.memory_space<smem>>, %arg3: memref<64x128xf32, #tpu.memory_space<any>>, %arg4: memref<4x128xf32, #tpu.memory_space<vmem>>, %arg5: memref<64x128xf32, #tpu.memory_space<vmem>>) attributes {dimension_semantics = [#tpu.dimension_semantics<arbitrary>], iteration_bounds = array<i64: 1>, scalar_prefetch = 2 : i64, scratch_operands = 1 : i64, tpu.core_type = #tpu.core_type<tc>, window_params = [{}, {pipeline_mode = #tpu.pipeline_mode<synchronous>, transform_indices = @transform_1, window_bounds = array<i64: 4, 128>}]} {
    "tpu.region"() ({
      %1 = tpu.sem_alloc : memref<!tpu.dma_semaphore, #tpu.memory_space<semaphore_mem>>
      tpu.enqueue_dma source(%arg3 : memref<64x128xf32, #tpu.memory_space<any>>) target(%arg5 : memref<64x128xf32, #tpu.memory_space<vmem>>) target_semaphore(%1 : memref<!tpu.dma_semaphore, #tpu.memory_space<semaphore_mem>>)
      tpu.wait_dma2 semaphore(%1 : memref<!tpu.dma_semaphore, #tpu.memory_space<semaphore_mem>>) src(%arg3 : memref<64x128xf32, #tpu.memory_space<any>>) dst(%arg5 : memref<64x128xf32, #tpu.memory_space<vmem>>)
      tpu.yield
    }) : () -> ()
    %c0_i32 = arith.constant 0 : i32
    %c4_i32 = arith.constant 4 : i32
    %0 = arith.addi %c0_i32, %c4_i32 : i32
    %c1_i32 = arith.constant 1 : i32
    scf.for %arg6 = %c0_i32 to %0 step %c1_i32  : i32 {
      %c1_i32_1 = arith.constant 1 : i32
      %1 = arith.muli %arg6, %c1_i32_1 : i32
      %c0_i32_2 = arith.constant 0 : i32
      %2 = arith.addi %c0_i32_2, %1 : i32
      %cst = arith.constant 0.000000e+00 : f32
      %3 = vector.broadcast %cst : f32 to vector<1x128xf32>
      %c0_i32_3 = arith.constant 0 : i32
      %c8_i32 = arith.constant 8 : i32
      %4 = arith.muli %2, %c8_i32 : i32
      %5 = arith.addi %4, %c0_i32_3 : i32
      %6 = arith.index_cast %5 : i32 to index
      %7 = memref.load %arg1[%6] : memref<32xi32, #tpu.memory_space<smem>>
      %8 = arith.index_cast %7 : i32 to index
      %c0 = arith.constant 0 : index
      %9 = vector.load %arg5[%8, %c0] : memref<64x128xf32, #tpu.memory_space<vmem>>, vector<1x128xf32>
      %10 = arith.addf %3, %9 : vector<1x128xf32>
      %c1_i32_4 = arith.constant 1 : i32
      %c8_i32_5 = arith.constant 8 : i32
      %11 = arith.muli %2, %c8_i32_5 : i32
      %12 = arith.addi %11, %c1_i32_4 : i32
      %13 = arith.index_cast %12 : i32 to index
      %14 = memref.load %arg1[%13] : memref<32xi32, #tpu.memory_space<smem>>
      %15 = arith.index_cast %14 : i32 to index
      %c0_6 = arith.constant 0 : index
      %16 = vector.load %arg5[%15, %c0_6] : memref<64x128xf32, #tpu.memory_space<vmem>>, vector<1x128xf32>
      %17 = arith.addf %10, %16 : vector<1x128xf32>
      %c2_i32 = arith.constant 2 : i32
      %c8_i32_7 = arith.constant 8 : i32
      %18 = arith.muli %2, %c8_i32_7 : i32
      %19 = arith.addi %18, %c2_i32 : i32
      %20 = arith.index_cast %19 : i32 to index
      %21 = memref.load %arg1[%20] : memref<32xi32, #tpu.memory_space<smem>>
      %22 = arith.index_cast %21 : i32 to index
      %c0_8 = arith.constant 0 : index
      %23 = vector.load %arg5[%22, %c0_8] : memref<64x128xf32, #tpu.memory_space<vmem>>, vector<1x128xf32>
      %24 = arith.addf %17, %23 : vector<1x128xf32>
      %c3_i32 = arith.constant 3 : i32
      %c8_i32_9 = arith.constant 8 : i32
      %25 = arith.muli %2, %c8_i32_9 : i32
      %26 = arith.addi %25, %c3_i32 : i32
      %27 = arith.index_cast %26 : i32 to index
      %28 = memref.load %arg1[%27] : memref<32xi32, #tpu.memory_space<smem>>
      %29 = arith.index_cast %28 : i32 to index
      %c0_10 = arith.constant 0 : index
      %30 = vector.load %arg5[%29, %c0_10] : memref<64x128xf32, #tpu.memory_space<vmem>>, vector<1x128xf32>
      %31 = arith.addf %24, %30 : vector<1x128xf32>
      %c4_i32_11 = arith.constant 4 : i32
      %c8_i32_12 = arith.constant 8 : i32
      %32 = arith.muli %2, %c8_i32_12 : i32
      %33 = arith.addi %32, %c4_i32_11 : i32
      %34 = arith.index_cast %33 : i32 to index
      %35 = memref.load %arg1[%34] : memref<32xi32, #tpu.memory_space<smem>>
      %36 = arith.index_cast %35 : i32 to index
      %c0_13 = arith.constant 0 : index
      %37 = vector.load %arg5[%36, %c0_13] : memref<64x128xf32, #tpu.memory_space<vmem>>, vector<1x128xf32>
      %38 = arith.addf %31, %37 : vector<1x128xf32>
      %c5_i32 = arith.constant 5 : i32
      %c8_i32_14 = arith.constant 8 : i32
      %39 = arith.muli %2, %c8_i32_14 : i32
      %40 = arith.addi %39, %c5_i32 : i32
      %41 = arith.index_cast %40 : i32 to index
      %42 = memref.load %arg1[%41] : memref<32xi32, #tpu.memory_space<smem>>
      %43 = arith.index_cast %42 : i32 to index
      %c0_15 = arith.constant 0 : index
      %44 = vector.load %arg5[%43, %c0_15] : memref<64x128xf32, #tpu.memory_space<vmem>>, vector<1x128xf32>
      %45 = arith.addf %38, %44 : vector<1x128xf32>
      %c6_i32 = arith.constant 6 : i32
      %c8_i32_16 = arith.constant 8 : i32
      %46 = arith.muli %2, %c8_i32_16 : i32
      %47 = arith.addi %46, %c6_i32 : i32
      %48 = arith.index_cast %47 : i32 to index
      %49 = memref.load %arg1[%48] : memref<32xi32, #tpu.memory_space<smem>>
      %50 = arith.index_cast %49 : i32 to index
      %c0_17 = arith.constant 0 : index
      %51 = vector.load %arg5[%50, %c0_17] : memref<64x128xf32, #tpu.memory_space<vmem>>, vector<1x128xf32>
      %52 = arith.addf %45, %51 : vector<1x128xf32>
      %c7_i32 = arith.constant 7 : i32
      %c8_i32_18 = arith.constant 8 : i32
      %53 = arith.muli %2, %c8_i32_18 : i32
      %54 = arith.addi %53, %c7_i32 : i32
      %55 = arith.index_cast %54 : i32 to index
      %56 = memref.load %arg1[%55] : memref<32xi32, #tpu.memory_space<smem>>
      %57 = arith.index_cast %56 : i32 to index
      %c0_19 = arith.constant 0 : index
      %58 = vector.load %arg5[%57, %c0_19] : memref<64x128xf32, #tpu.memory_space<vmem>>, vector<1x128xf32>
      %59 = arith.addf %52, %58 : vector<1x128xf32>
      %c8_i32_20 = arith.constant 8 : i32
      %60 = arith.index_cast %2 : i32 to index
      %61 = memref.load %arg2[%60] : memref<4xf32, #tpu.memory_space<smem>>
      %62 = vector.broadcast %61 : f32 to vector<1x128xf32>
      %63 = arith.mulf %59, %62 : vector<1x128xf32>
      %64 = arith.index_cast %2 : i32 to index
      %c0_21 = arith.constant 0 : index
      %65 = vector.load %arg4[%64, %c0_21] : memref<4x128xf32, #tpu.memory_space<vmem>>, vector<1x128xf32>
      tpu.vector_store %arg4[%64, %c0_21], %63 {strides = array<i32>} : memref<4x128xf32, #tpu.memory_space<vmem>>, vector<1x128xf32>,
    }
    %c4_i32_0 = arith.constant 4 : i32
    return
  }
  func.func @transform_1(%arg0: i32, %arg1: memref<32xi32, #tpu.memory_space<smem>>, %arg2: memref<4xf32, #tpu.memory_space<smem>>) -> (i32, i32) {
    %c0_i32 = arith.constant 0 : i32
    %c0_i32_0 = arith.constant 0 : i32
    %c0_i32_1 = arith.constant 0 : i32
    return %c0_i32, %c0_i32_0 : i32, i32
  }
}

</mosaic_0001>

<llo_original>
// kernel: tpu_custom_call.1
$region0: #{tpu_custom_call.1}
  #allocation0 [shape = 'u32[]', space=smem, size = 0x4, offset = 0x4, fixed_abs, tag = 'smem constant byte address 0x4 - core index']
  #allocation1 [shape = 'u32[144,128]{1,0:T(1,128)}', space=vmem, size = 0x12000, scoped, tag = 'internal scratch']
  #allocation2 [shape = 'f32[64,128]{1,0:T(8,128)}', space=vmem, size = 0x8000, scoped, tag = 'scratch operand']
  #allocation3 [shape = 's32[1]{0}', space=sflag, size = 0x4, scoped, tag = 'scoped memory for tpu_custom_call.1']
  #allocation4 [shape = 'u8[512]{0}', space=smem, size = 0x200, scoped, tag = 'prefetched SMEM operand 0']
  #allocation5 [shape = 'u8[512]{0}', space=smem, size = 0x200, scoped, tag = 'prefetched SMEM operand 1']
  #allocation9 [shape = 's32[]', space=sflag, size = 0x4, offset = 0, fixed_abs, tag = 'sflag constant byte address 0x0 - dummy sync flag']
  #allocation10 [shape = 's32[]', space=sflag, size = 0x4, offset = 0, fixed_abs, tag = 'sflag constant byte address 0x0 - dummy sync flag']
  #allocation11 [shape = 'u32[]', space=smem, size = 0x4, offset = 0x44, fixed_abs, tag = 'smem constant byte address 0x44 - assertion arg 0']
  #allocation12 [shape = 'u32[]', space=smem, size = 0x4, offset = 0x48, fixed_abs, tag = 'smem constant byte address 0x48 - assertion arg 1']
  %s0 = inlined_call_operand.hbm [shape: s32[32], index: 0, kind: input, shape index: {}]
  %s1 = inlined_call_operand.vmem [shape: f32[4], index: 1, kind: input, shape index: {}]
  %s2 = inlined_call_operand.hbm [shape: f32[64,128], index: 2, kind: input, shape index: {}]
  %s3 = inlined_call_operand.hbm [shape: f32[4,128], index: 3, kind: output, shape index: {}]
  %s4 = sld [smem:[#allocation0]]
  $region22: #{tpu_custom_call.1} parent=0
    _
  %s6 = ssub.s32 1, %s4
  %s7 = scalar_select 0, %s6, %s4
  %9 = dma.hbm_to_smem %s0, 16, [#allocation4], [#allocation3]
  %s10 = sshll.u32 %s1, 4
  %s11 = int_to_ptr.vmem [resolvable:$true] %s10
  %13 = dma.vmem_to_smem %s11, 16, [#allocation5], [#allocation3]
  %14 = dma.done [#allocation3], 32
  %15 = sfence
  $region1: #{tpu_custom_call.1} parent=0
    #allocation6 [shape = 'u8[2048]{0}', space=vmem, size = 0x800, scoped, tag = 'output window, operand 0, single buffered']
    #allocation7 [shape = 's32[1]{0}', space=sflag, size = 0x4, scoped, tag = 'scoped memory for tpu_custom_call.1']
    %16 = vsyncpa [#allocation7], 0
    $region2: #{tpu_custom_call.1} parent=1
      #allocation8 [shape = 's32[1]{0}', space=sflag, size = 0x4, scoped, tag = 'scoped memory for tpu_custom_call.1']
      // Predicated region
      $region3: #{tpu_custom_call.1} parent=2 // pred_check
        _
      $region4: #{tpu_custom_call.1} parent=2 // pred_check_branch
        %18 = sbr.rel target = $region6
      $region5: #{tpu_custom_call.1} parent=2 // pred_region
        %19 = sst [smem:[#allocation11]] [#allocation10]
        %20 = sst [smem:[#allocation12]] [#allocation9]
      $region6: #{tpu_custom_call.1} parent=2 // pred_fallthru
        _
      %22 = shalt.err (0)
      %s24 = sshll.u32 [#allocation2], 4
      %s25 = int_to_ptr.vmem [resolvable:$true] %s24
      %27 = dma.hbm_to_vmem [thread:$0]  %s2, 1024, %s25, [#allocation8]
      %s28 = smul.u32 64, 1
      %s29 = sshll.u32 %s28, 4
      %30 = dma.done [#allocation8], %s29
    loop: start=0, step=1, limit=4
    $region7: #{tpu_custom_call.1} parent=1 // loop_pre_header
      _
    $region8: #{tpu_custom_call.1} parent=1 // loop_header
      %s32 = sphi 0, %s36
      %p33 = scmp.ge.s32.totalorder %s32, 4
    $region9: #{tpu_custom_call.1} parent=1 // loop_header_branch
      %35 = sbr.rel (%p33) target = $region13
    $region10: #{tpu_custom_call.1} parent=1 // loop_body
      %s37 = smul.u32 %s32, 8
      %s38 = sld [smem:[#allocation4 + %s37]]
      %s39 = scalar_lea.vmem [#allocation2], %s38
      %v40 = vld [vmem:[%s39] sm:$0x1]
      %v41 = vadd.f32 %v40, 0.0
      %s42 = sadd.s32 %s37, 1
      %s43 = sld [smem:[#allocation4 + %s42]]
      %s44 = scalar_lea.vmem [#allocation2], %s43
      %v45 = vld [vmem:[%s44] sm:$0x1]
      %v46 = vadd.f32 %v41, %v45
      %s47 = sadd.s32 %s37, 2
      %s48 = sld [smem:[#allocation4 + %s47]]
      %s49 = scalar_lea.vmem [#allocation2], %s48
      %v50 = vld [vmem:[%s49] sm:$0x1]
      %v51 = vadd.f32 %v46, %v50
      %s52 = sadd.s32 %s37, 3
      %s53 = sld [smem:[#allocation4 + %s52]]
      %s54 = scalar_lea.vmem [#allocation2], %s53
      %v55 = vld [vmem:[%s54] sm:$0x1]
      %v56 = vadd.f32 %v51, %v55
      %s57 = sadd.s32 %s37, 4
      %s58 = sld [smem:[#allocation4 + %s57]]
      %s59 = scalar_lea.vmem [#allocation2], %s58
      %v60 = vld [vmem:[%s59] sm:$0x1]
      %v61 = vadd.f32 %v56, %v60
      %s62 = sadd.s32 %s37, 5
      %s63 = sld [smem:[#allocation4 + %s62]]
      %s64 = scalar_lea.vmem [#allocation2], %s63
      %v65 = vld [vmem:[%s64] sm:$0x1]
      %v66 = vadd.f32 %v61, %v65
      %s67 = sadd.s32 %s37, 6
      %s68 = sld [smem:[#allocation4 + %s67]]
      %s69 = scalar_lea.vmem [#allocation2], %s68
      %v70 = vld [vmem:[%s69] sm:$0x1]
      %v71 = vadd.f32 %v66, %v70
      %s72 = sadd.s32 %s37, 7
      %s73 = sld [smem:[#allocation4 + %s72]]
      %s74 = scalar_lea.vmem [#allocation2], %s73
      %v75 = vld [vmem:[%s74] sm:$0x1]
      %v76 = vadd.f32 %v71, %v75
      %s77 = sld [smem:[#allocation5 + %s32]]
      %v78 = vstv %s77
      %v79 = vmul.f32 %v76, %v78
      %s80 = scalar_lea.vmem [#allocation6], %s32
      %81 = vst [vmem:[%s80] sm:$0x1] %v79
    $region11: #{tpu_custom_call.1} parent=1 // loop_footer
      %s36 = sadd.s32 1, %s32
    $region12: #{tpu_custom_call.1} parent=1 // loop_footer_branch
      %31 = sbr.rel target = $region8
    $region13: #{tpu_custom_call.1} parent=1 // loop_exit
      _
    // Predicated region
    $region14: #{tpu_custom_call.1} parent=1 // pred_check
      _
    $region15: #{tpu_custom_call.1} parent=1 // pred_check_branch
      %83 = sbr.rel (0) target = $region17
    $region16: #{tpu_custom_call.1} parent=1 // pred_region
      %s85 = ssub.s32 64, 64
      %86 = vsyncadd [#allocation7], %s85
      %s88 = sshll.u32 [#allocation6], 4
      %s89 = int_to_ptr.vmem [resolvable:$true] %s88
      %91 = dma.vmem_to_hbm [thread:$0]  %s89, 64, %s3, [#allocation7]
    $region17: #{tpu_custom_call.1} parent=1 // pred_fallthru
      _
    // Predicated region
    $region18: #{tpu_custom_call.1} parent=1 // pred_check
      _
    $region19: #{tpu_custom_call.1} parent=1 // pred_check_branch
      %93 = sbr.rel (0) target = $region21
    $region20: #{tpu_custom_call.1} parent=1 // pred_region
      %94 = dma.done [#allocation7], 64
    $region21: #{tpu_custom_call.1} parent=1 // pred_fallthru
      _
    %95 = vsyncpa [#allocation7], 1

</llo_original>
